<compile_context>
chip_gen: v5e
topology: v5e:2x2
jax: 0.10.0
libtpu: 0.0.40
codegen_flags: <defaults>
</compile_context>

<pallas_src>
import functools

import jax
import jax.numpy as jnp
from jax.experimental import pallas as pl
from jax.experimental.pallas import tpu as pltpu

_TARGET_BLOCK_ELEMS = 1 << 20   # ~4 MiB f32 per input block (tile_r=2048 @ lane=512)


def _round_up(x, m):
    return ((x + m - 1) // m) * m


def _recon_sum_kernel(x_ref, t_ref, out_ref, acc_ref, *,
                      r_loss, inv_batch, flat_rows, tile_r, lane, has_tail):
    c = pl.program_id(0)          # core / split index   ("parallel")
    i = pl.program_id(1)          # streaming tile index ("arbitrary")
    n_i = pl.num_programs(1)

    @pl.when(i == 0)
    def _():
        acc_ref[...] = jnp.zeros_like(acc_ref)

    # Global starting row of this (possibly partial, possibly dummy) tile.
    row0 = (c * n_i + i) * tile_r

    def accumulate(mask_tail):
        x = x_ref[...].astype(jnp.float32)
        t = t_ref[...].astype(jnp.float32)
        if r_loss == "MSE":
            d = x - t
            contrib = d * d
        else:  # BCE (sum reduction), torch.nn.BCELoss log clamp at -100
            log_x = jnp.maximum(jnp.log(x), -100.0)
            log_1mx = jnp.maximum(jnp.log(1.0 - x), -100.0)
            contrib = t * (log_1mx - log_x) - log_1mx
        if mask_tail:
            rows = row0 + jax.lax.broadcasted_iota(jnp.int32, (tile_r, 1), 0)
            contrib = jnp.where(rows < flat_rows, contrib, 0.0)
        if tile_r % 8 == 0:
            # Sublane-group reduce: pure aligned vreg adds into an (8, lane)
            # accumulator (no XLU work, no full-block VMEM accumulator traffic).
            acc_ref[...] += contrib.reshape(tile_r // 8, 8, lane).sum(axis=0)
        else:
            # Tiny full-array block (flat_rows < 16): acc is (tile_r, lane).
            acc_ref[...] += contrib

    if has_tail:
        full = row0 + tile_r <= flat_rows

        @pl.when(full)
        def _():
            accumulate(False)

        @pl.when(jnp.logical_not(full))
        def _():
            accumulate(True)
    else:
        accumulate(False)

    @pl.when(i == n_i - 1)
    def _():
        out_ref[0, 0] = jnp.sum(acc_ref[...]) * inv_batch


def vae_loss(inpt, target, mu, logvar, *, r_loss="MSE", beta=1.0,
             block_elems=_TARGET_BLOCK_ELEMS):
    if r_loss not in ("MSE", "BCE"):
        raise ValueError("Reconstruction Loss not in [MSE, BCE]")

    B = inpt.shape[0]
    total = int(inpt.size)

    # Lane width: largest of 512/256/128 dividing the element count so the
    # flatten -> 2-D reshape is a free (no-copy) relayout.
    lane = next((w for w in (512, 256, 128) if total % w == 0), None)
    x = inpt.reshape(-1)
    t = target.reshape(-1)
    if lane is None:
        # TODO(synk): rare path (element count not a multiple of 128) still
        # materializes one padded copy (<= 127 extra elements; pad value 1.0
        # contributes exactly 0 to both MSE and clamped BCE).
        lane = 128
        padded = _round_up(total, lane)
        x = jnp.pad(x, (0, padded - total), constant_values=1.0)
        t = jnp.pad(t, (0, padded - total), constant_values=1.0)
        total = padded
    flat_rows = total // lane
    x = x.reshape(flat_rows, lane)
    t = t.reshape(flat_rows, lane)

    # Tile rows: multiple of 16 (bf16-safe), <= flat_rows, ~block_elems elems.
    if flat_rows >= 16:
        target_rows = max(16, (block_elems // lane) // 16 * 16)
        tile_r = min(target_rows, flat_rows // 16 * 16)
    else:
        tile_r = flat_rows            # tiny input: single full-array block
    n_tiles = -(-flat_rows // tile_r)

    # Two-way split of the tile stream (megacore on v7x; plain sequential loop
    # on single-TC v5e/v6e).  Each split accumulates its own partial sum.
    nsplit = 2 if n_tiles >= 2 else 1
    tps = -(-n_tiles // nsplit)       # tiles per split
    has_tail = (flat_rows % tile_r != 0) or (nsplit * tps != n_tiles)

    acc_rows = 8 if tile_r % 8 == 0 else tile_r

    def in_map(c, i):
        # Clamp dummy trailing tiles (odd n_tiles split over 2 cores) onto the
        # last real block; the kernel masks their contribution to zero.
        return (jnp.minimum(c * tps + i, n_tiles - 1), 0)

    kernel = functools.partial(
        _recon_sum_kernel, r_loss=r_loss, inv_batch=1.0 / float(B),
        flat_rows=flat_rows, tile_r=tile_r, lane=lane, has_tail=has_tail)

    partials = pl.pallas_call(
        kernel,
        out_shape=jax.ShapeDtypeStruct((nsplit, 1), jnp.float32),
        grid_spec=pltpu.PrefetchScalarGridSpec(
            num_scalar_prefetch=0,
            grid=(nsplit, tps),
            in_specs=[
                pl.BlockSpec((tile_r, lane), in_map),
                pl.BlockSpec((tile_r, lane), in_map),
            ],
            out_specs=pl.BlockSpec((1, 1), lambda c, i: (c, 0),
                                   memory_space=pltpu.SMEM),
            scratch_shapes=[pltpu.VMEM((acc_rows, lane), jnp.float32)],
        ),
        compiler_params=pltpu.CompilerParams(
            dimension_semantics=("parallel", "arbitrary"),
            vmem_limit_bytes=40 * 1024 * 1024),
    )(x, t)

    recon = jnp.sum(partials)

    # KLD hoisted out of the streaming kernel (tiny O(B*L) work).
    mu32 = mu.astype(jnp.float32)
    lv32 = logvar.astype(jnp.float32)
    kld = -0.5 * jnp.mean(1.0 + lv32 - mu32 * mu32 - jnp.exp(lv32))
    return recon + beta * kld


def _reference(inpt, target, mu, logvar, r_loss, beta):
    B = inpt.shape[0]
    x = inpt.reshape(B, -1).astype(jnp.float32)
    t = target.reshape(B, -1).astype(jnp.float32)
    if r_loss == "MSE":
        r = jnp.sum((x - t) ** 2)
    else:
        log_x = jnp.maximum(jnp.log(x), -100.0)
        log_1mx = jnp.maximum(jnp.log(1.0 - x), -100.0)
        r = jnp.sum(-(t * log_x + (1.0 - t) * log_1mx))
    kld = -0.5 * jnp.mean(1.0 + logvar - mu ** 2 - jnp.exp(logvar))
    return r / B + beta * kld


if __name__ == "__main__":
    key = jax.random.PRNGKey(0)

    # (shape, latent_dim, block_elems): the second case forces small blocks to
    # exercise multi-tile streaming, the 2-way split, the clamped dummy tile
    # and the masked row tail at small sizes.
    cases = [
        ((2, 4, 16, 16), 32, _TARGET_BLOCK_ELEMS),
        ((4, 5, 32, 32), 32, 16 * 512),
    ]

    ok = True
    for idx, (shape, L, blk) in enumerate(cases):
        ks = jax.random.split(jax.random.fold_in(key, idx), 4)
        # inputs in (0, 1) so BCE is well-defined
        inpt = jax.nn.sigmoid(jax.random.normal(ks[0], shape, jnp.float32))
        target = jax.random.uniform(ks[1], shape, jnp.float32,
                                    minval=0.01, maxval=0.99)
        mu = jax.random.normal(ks[2], (shape[0], L), jnp.float32)
        logvar = 0.1 * jax.random.normal(ks[3], (shape[0], L), jnp.float32)

        for mode in ("MSE", "BCE"):
            out = vae_loss(inpt, target, mu, logvar, r_loss=mode, beta=1.0,
                           block_elems=blk)
            out = jax.block_until_ready(out)
            ref = _reference(inpt, target, mu, logvar, mode, 1.0)
            if not jnp.allclose(out, ref, rtol=1e-4, atol=1e-4):
                ok = False
                print(f"MISMATCH shape={shape} {mode}: kernel={out} ref={ref}")

    if ok:
        print("KERNEL_OK")
</pallas_src>

<mosaic_0001>
module attributes {stable_mosaic.version = 11 : i64} {
  func.func @_recon_sum_kernel(%arg0: i32, %arg1: i32, %arg2: memref<4x512xf32, #tpu.memory_space<vmem>>, %arg3: memref<4x512xf32, #tpu.memory_space<vmem>>, %arg4: memref<1x1xf32, #tpu.memory_space<smem>>, %arg5: memref<4x512xf32, #tpu.memory_space<vmem>>) attributes {dimension_semantics = [#tpu.dimension_semantics<parallel>, #tpu.dimension_semantics<arbitrary>], iteration_bounds = array<i64: 1, 1>, scalar_prefetch = 0 : i64, scratch_operands = 1 : i64, tpu.core_type = #tpu.core_type<tc>, window_params = [{transform_indices = @transform_0, window_bounds = array<i64: 4, 512>}, {transform_indices = @transform_1, window_bounds = array<i64: 4, 512>}, {transform_indices = @transform_2, window_bounds = array<i64: 1, 1>}]} {
    %c0_i32 = arith.constant 0 : i32
    %0 = arith.cmpi eq, %arg1, %c0_i32 : i32
    %1 = arith.extui %0 : i1 to i32
    %c0_i32_0 = arith.constant 0 : i32
    %2 = arith.cmpi ne, %1, %c0_i32_0 : i32
    scf.if %2 {
      %cst = arith.constant 0.000000e+00 : f32
      %13 = vector.broadcast %cst : f32 to vector<4x512xf32>
      %c0_10 = arith.constant 0 : index
      %c0_11 = arith.constant 0 : index
      %14 = vector.load %arg5[%c0_10, %c0_11] : memref<4x512xf32, #tpu.memory_space<vmem>>, vector<4x512xf32>
      tpu.vector_store %arg5[%c0_10, %c0_11], %13 {strides = array<i32>} : memref<4x512xf32, #tpu.memory_space<vmem>>, vector<4x512xf32>,
    } else {
    }
    %c0 = arith.constant 0 : index
    %c0_1 = arith.constant 0 : index
    %3 = vector.load %arg2[%c0, %c0_1] : memref<4x512xf32, #tpu.memory_space<vmem>>, vector<4x512xf32>
    %c0_2 = arith.constant 0 : index
    %c0_3 = arith.constant 0 : index
    %4 = vector.load %arg3[%c0_2, %c0_3] : memref<4x512xf32, #tpu.memory_space<vmem>>, vector<4x512xf32>
    %5 = arith.subf %3, %4 : vector<4x512xf32>
    %6 = arith.mulf %5, %5 : vector<4x512xf32>
    %c0_4 = arith.constant 0 : index
    %c0_5 = arith.constant 0 : index
    %7 = vector.load %arg5[%c0_4, %c0_5] : memref<4x512xf32, #tpu.memory_space<vmem>>, vector<4x512xf32>
    %8 = arith.addf %7, %6 : vector<4x512xf32>
    %c0_6 = arith.constant 0 : index
    %c0_7 = arith.constant 0 : index
    %9 = vector.load %arg5[%c0_6, %c0_7] : memref<4x512xf32, #tpu.memory_space<vmem>>, vector<4x512xf32>
    tpu.vector_store %arg5[%c0_6, %c0_7], %8 {strides = array<i32>} : memref<4x512xf32, #tpu.memory_space<vmem>>, vector<4x512xf32>,
    %c0_i32_8 = arith.constant 0 : i32
    %10 = arith.cmpi eq, %arg1, %c0_i32_8 : i32
    %11 = arith.extui %10 : i1 to i32
    %c0_i32_9 = arith.constant 0 : i32
    %12 = arith.cmpi ne, %11, %c0_i32_9 : i32
    scf.if %12 {
      %c0_10 = arith.constant 0 : index
      %c0_11 = arith.constant 0 : index
      %13 = vector.load %arg5[%c0_10, %c0_11] : memref<4x512xf32, #tpu.memory_space<vmem>>, vector<4x512xf32>
      %14 = vector.shape_cast %13 : vector<4x512xf32> to vector<1x4x512xf32>
      %cst = arith.constant dense<0.000000e+00> : vector<1xf32>
      %15 = vector.multi_reduction <add>, %14, %cst [1, 2] : vector<1x4x512xf32> to vector<1xf32>
      %16 = vector.shape_cast %15 : vector<1xf32> to vector<1x1x1xf32>
      %17 = vector.extract %16[0, 0, 0] : f32 from vector<1x1x1xf32>
      %cst_12 = arith.constant 5.000000e-01 : f32
      %18 = arith.mulf %17, %cst_12 : f32
      %c0_13 = arith.constant 0 : index
      %c0_14 = arith.constant 0 : index
      %19 = memref.load %arg4[%c0_13, %c0_14] : memref<1x1xf32, #tpu.memory_space<smem>>
      memref.store %18, %arg4[%c0_13, %c0_14] : memref<1x1xf32, #tpu.memory_space<smem>>
    } else {
    }
    return
  }
  func.func @transform_0(%arg0: i32, %arg1: i32) -> (i32, i32) {
    %c1_i32 = arith.constant 1 : i32
    %0 = arith.muli %arg0, %c1_i32 : i32
    %1 = arith.addi %0, %arg1 : i32
    %c0_i32 = arith.constant 0 : i32
    %2 = arith.minsi %1, %c0_i32 : i32
    %c0_i32_0 = arith.constant 0 : i32
    %c0_i32_1 = arith.constant 0 : i32
    return %2, %c0_i32_0 : i32, i32
  }
  func.func @transform_1(%arg0: i32, %arg1: i32) -> (i32, i32) {
    %c1_i32 = arith.constant 1 : i32
    %0 = arith.muli %arg0, %c1_i32 : i32
    %1 = arith.addi %0, %arg1 : i32
    %c0_i32 = arith.constant 0 : i32
    %2 = arith.minsi %1, %c0_i32 : i32
    %c0_i32_0 = arith.constant 0 : i32
    %c0_i32_1 = arith.constant 0 : i32
    return %2, %c0_i32_0 : i32, i32
  }
  func.func @transform_2(%arg0: i32, %arg1: i32) -> (i32, i32) {
    %c0_i32 = arith.constant 0 : i32
    %c0_i32_0 = arith.constant 0 : i32
    return %arg0, %c0_i32 : i32, i32
  }
}

</mosaic_0001>

<llo_original>
// kernel: tpu_custom_call.1
$region0: #{tpu_custom_call.1}
  #allocation0 [shape = 'u32[]', space=smem, size = 0x4, offset = 0x4, fixed_abs, tag = 'smem constant byte address 0x4 - core index']
  #allocation1 [shape = 'u32[72,128]{1,0:T(1,128)}', space=vmem, size = 0x9000, scoped, tag = 'internal scratch']
  #allocation2 [shape = 'f32[4,512]{1,0:T(4,128)}', space=vmem, size = 0x2000, scoped, tag = 'scratch operand']
  %s0 = inlined_call_operand.hbm [shape: f32[4,512], index: 0, kind: input, shape index: {}]
  %s1 = inlined_call_operand.hbm [shape: f32[4,512], index: 1, kind: input, shape index: {}]
  %s2 = inlined_call_operand.hbm [shape: f32[1,1], index: 2, kind: output, shape index: {}]
  %s3 = sld [smem:[#allocation0]]
  $region34: #{tpu_custom_call.1} parent=0
    _
  %s5 = ssub.s32 1, %s3
  %s6 = scalar_select 0, %s5, %s3
  $region1: #{tpu_custom_call.1} parent=0
    #allocation3 [shape = 'u8[8192]{0}', space=vmem, size = 0x2000, scoped, tag = 'input window, operand 0, single buffered']
    #allocation4 [shape = 's32[1]{0}', space=sflag, size = 0x4, scoped, tag = 'scoped memory for tpu_custom_call.1']
    #allocation5 [shape = 's32[1]{0}', space=sflag, size = 0x4, scoped, tag = 'scoped memory for tpu_custom_call.1']
    #allocation6 [shape = 'u8[8192]{0}', space=vmem, size = 0x2000, scoped, tag = 'input window, operand 1, single buffered']
    #allocation7 [shape = 's32[1]{0}', space=sflag, size = 0x4, scoped, tag = 'scoped memory for tpu_custom_call.1']
    #allocation8 [shape = 'u8[512]{0}', space=smem, size = 0x200, scoped, tag = 'output window, operand 0, single buffered']
    %7 = vsyncpa [#allocation4], 0
    %8 = vsyncpa [#allocation7], 0
    %9 = vsyncpa [#allocation5], 0
    // Predicated region
    $region2: #{tpu_custom_call.1} parent=1 // pred_check
      _
    $region3: #{tpu_custom_call.1} parent=1 // pred_check_branch
      %11 = sbr.rel (0) target = $region5
    $region4: #{tpu_custom_call.1} parent=1 // pred_region
      %s12 = sadd.s32 0, 0
      %p13 = scmp.lt.s32.totalorder %s12, 0
      %s14 = scalar_select %p13, %s12, 0
      %16 = vsyncadd [#allocation4], 0
      %s17 = smul.addr %s14, 4
      %s18 = smul.addr %s17, 4
      %s19 = scalar_lea.hbm %s0, %s18
      %s21 = sshll.u32 %s19, 4
      %s22 = int_to_ptr.hbm [resolvable:$true] %s21
      %s23 = sshll.u32 [#allocation3], 4
      %s24 = int_to_ptr.vmem [resolvable:$true] %s23
      %26 = dma.hbm_to_vmem [thread:$0]  %s22, 256, %s24, [#allocation4]
    $region5: #{tpu_custom_call.1} parent=1 // pred_fallthru
      _
    // Predicated region
    $region6: #{tpu_custom_call.1} parent=1 // pred_check
      _
    $region7: #{tpu_custom_call.1} parent=1 // pred_check_branch
      %28 = sbr.rel (0) target = $region9
    $region8: #{tpu_custom_call.1} parent=1 // pred_region
      %s29 = sadd.s32 0, 0
      %p30 = scmp.lt.s32.totalorder %s29, 0
      %s31 = scalar_select %p30, %s29, 0
      %33 = vsyncadd [#allocation7], 0
      %s34 = smul.addr %s31, 4
      %s35 = smul.addr %s34, 4
      %s36 = scalar_lea.hbm %s1, %s35
      %s38 = sshll.u32 %s36, 4
      %s39 = int_to_ptr.hbm [resolvable:$true] %s38
      %s40 = sshll.u32 [#allocation6], 4
      %s41 = int_to_ptr.vmem [resolvable:$true] %s40
      %43 = dma.hbm_to_vmem [thread:$0]  %s39, 256, %s41, [#allocation7]
    $region9: #{tpu_custom_call.1} parent=1 // pred_fallthru
      _
    // Predicated region
    $region10: #{tpu_custom_call.1} parent=1 // pred_check
      _
    $region11: #{tpu_custom_call.1} parent=1 // pred_check_branch
      %45 = sbr.rel (0) target = $region13
    $region12: #{tpu_custom_call.1} parent=1 // pred_region
      %47 = dma.done [#allocation4], 256
    $region13: #{tpu_custom_call.1} parent=1 // pred_fallthru
      _
    // Predicated region
    $region14: #{tpu_custom_call.1} parent=1 // pred_check
      _
    $region15: #{tpu_custom_call.1} parent=1 // pred_check_branch
      %49 = sbr.rel (0) target = $region17
    $region16: #{tpu_custom_call.1} parent=1 // pred_region
      %51 = dma.done [#allocation7], 256
    $region17: #{tpu_custom_call.1} parent=1 // pred_fallthru
      _
    %s52 = sadd.s32 0, 0
    %p53 = scmp.lt.s32.totalorder %s52, 0
    %s54 = scalar_select %p53, %s52, 0
    %s55 = sadd.s32 0, 0
    %p56 = scmp.lt.s32.totalorder %s55, 0
    %s57 = scalar_select %p56, %s55, 0
    %p58 = scmp.eq.s32.totalorder 0, 0
    // Predicated region
    $region18: #{tpu_custom_call.1} parent=1 // pred_check
      %p59 = pneg %p58
    $region19: #{tpu_custom_call.1} parent=1 // pred_check_branch
      %61 = sbr.rel (%p59) target = $region21
    $region20: #{tpu_custom_call.1} parent=1 // pred_region
      %62 = vst [vmem:[#allocation2] sm:$0xff] 0.0
      %63 = vst [vmem:[#allocation2 + $0x8] sm:$0xff] 0.0
    $region21: #{tpu_custom_call.1} parent=1 // pred_fallthru
      _
    %v64 = vld [vmem:[#allocation3] sm:$0xff]
    %v65 = vld [vmem:[#allocation3 + $0x8] sm:$0xff]
    %v66 = vld [vmem:[#allocation6] sm:$0xff]
    %v67 = vld [vmem:[#allocation6 + $0x8] sm:$0xff]
    %v68 = vsub.f32 %v64, %v66
    %v69 = vsub.f32 %v65, %v67
    %v70 = vmul.f32 %v68, %v68
    %v71 = vmul.f32 %v69, %v69
    %v72 = vld [vmem:[#allocation2] sm:$0xff]
    %v73 = vld [vmem:[#allocation2 + $0x8] sm:$0xff]
    %v74 = vadd.f32 %v72, %v70
    %v75 = vadd.f32 %v73, %v71
    %76 = vst [vmem:[#allocation2] sm:$0xff] %v74
    %77 = vst [vmem:[#allocation2 + $0x8] sm:$0xff] %v75
    // Predicated region
    $region22: #{tpu_custom_call.1} parent=1 // pred_check
      %p78 = pneg %p58
    $region23: #{tpu_custom_call.1} parent=1 // pred_check_branch
      %80 = sbr.rel (%p78) target = $region25
    $region24: #{tpu_custom_call.1} parent=1 // pred_region
      %v81 = vld [vmem:[#allocation2] sm:$0xff]
      %v82 = vld [vmem:[#allocation2 + $0x8] sm:$0xff]
      %85 = vst [vmem:[#allocation1] ss:$2 sm:$0xff] %v81
      %s86 = scalar_lea.vmem [#allocation1], 16
      %87 = vst [vmem:[%s86] ss:$2 sm:$0xff] %v82
      %v88 = vld.sshfl [vmem:[#allocation1] sm:$0xff pattern:$0x75316420]
      %v89 = vld.sshfl [vmem:[#allocation1 + $0x8] sm:$0xff pattern:$0x75316420]
      %v90 = vld.sshfl [vmem:[#allocation1 + $0x10] sm:$0xff pattern:$0x75316420]
      %v91 = vld.sshfl [vmem:[#allocation1 + $0x18] sm:$0xff pattern:$0x75316420]
      %vm96 = vcmask 1043456
      %v97 = vsel %vm96, %v88, 0.0
      %v98 = vsel %vm96, %v89, 0.0
      %v99 = vadd.f32 %v97, %v98
      %v100 = vsel %vm96, %v90, 0.0
      %v101 = vadd.f32 %v99, %v100
      %v102 = vsel %vm96, %v91, 0.0
      %v103 = vadd.f32 %v101, %v102
      %104 = vadd.xlane.f32.xlu0 %v103
      %v105 = vpop.xlane.xlu0 %104
      %v106 = vrot.slane %v105, 4
      %v107 = vadd.f32 %v105, %v106
      %v108 = vrot.slane %v107, 2
      %v109 = vadd.f32 %v107, %v108
      %v110 = vrot.slane %v109, 1
      %v111 = vadd.f32 %v109, %v110
      %s112 = vtos %v111
      %s113 = smul.f32 %s112, 0.5
      %s114 = scalar_lea.smem [#allocation8], 0
      %115 = sst [smem:[%s114]] %s113
    $region25: #{tpu_custom_call.1} parent=1 // pred_fallthru
      _
    // Predicated region
    $region26: #{tpu_custom_call.1} parent=1 // pred_check
      _
    $region27: #{tpu_custom_call.1} parent=1 // pred_check_branch
      %117 = sbr.rel (0) target = $region29
    $region28: #{tpu_custom_call.1} parent=1 // pred_region
      %119 = vsyncadd [#allocation5], 0
      %s121 = sshll.u32 %s2, 4
      %s122 = int_to_ptr.hbm [resolvable:$true] %s121
      %124 = dma.smem_to_hbm [#allocation8], 16, %s122, [#allocation5]
    $region29: #{tpu_custom_call.1} parent=1 // pred_fallthru
      _
    // Predicated region
    $region30: #{tpu_custom_call.1} parent=1 // pred_check
      _
    $region31: #{tpu_custom_call.1} parent=1 // pred_check_branch
      %126 = sbr.rel (0) target = $region33
    $region32: #{tpu_custom_call.1} parent=1 // pred_region
      %128 = dma.done [#allocation5], 16
    $region33: #{tpu_custom_call.1} parent=1 // pred_fallthru
      _
    %129 = sfence
    %130 = vsyncpa [#allocation4], 1
    %131 = vsyncpa [#allocation7], 1
    %132 = vsyncpa [#allocation5], 1

</llo_original>
